<compile_context>
chip_gen: v7x
topology: tpu7x:2x2x1
jax: 0.10.0
libtpu: 0.0.40
codegen_flags: <defaults>
</compile_context>

<pallas_src>
import math
from functools import partial

import jax
import jax.numpy as jnp
from jax.experimental import pallas as pl
from jax.experimental.pallas import tpu as pltpu


# ------------------------------------------------------------------
# CNN frame encoder (stand-in) + fused positional-encoding add
# TODO(synk): `CustomCNN` is not defined in the reference source; we use a
# deterministic stand-in: 3x3 valid conv (C -> hidden_dim) + ReLU + global
# average pool per frame.  im2col is done in the XLA wrapper (glue); for real
# frame sizes the conv should avoid the kh*kw HBM blow-up (in-kernel shifted
# views or lax.conv).
# ------------------------------------------------------------------
def _cnn_pe_kernel(patches_ref, w_ref, b_ref, pe_ref, out_ref, *,
                   patches_per_frame):
    # One big (tile_n*P, K) x (K, E) MXU matmul in bf16, f32 accumulation.
    acts = jnp.dot(patches_ref[...], w_ref[...],
                   preferred_element_type=jnp.float32) + b_ref[0]
    acts = jnp.maximum(acts, 0.0)                          # ReLU
    tn = out_ref.shape[0]
    acts = acts.reshape(tn, patches_per_frame, acts.shape[-1])
    # global average pool per frame + fused positional-encoding add
    out_ref[...] = jnp.mean(acts, axis=1) + pe_ref[...]


def _pick_tile(n, p, cap=256):
    # Largest divisor of n (<= cap) whose row block (tile*p) stays 8-aligned.
    for t in range(min(n, cap), 0, -1):
        if n % t == 0 and (t == n or (t * p) % 8 == 0):
            return t
    return n


def cnn_forward(patches2d, conv_w, conv_b, pe_full, *, patches_per_frame):
    NP, K = patches2d.shape
    N = NP // patches_per_frame
    E = conv_w.shape[1]
    tile_n = _pick_tile(N, patches_per_frame)
    return pl.pallas_call(
        partial(_cnn_pe_kernel, patches_per_frame=patches_per_frame),
        out_shape=jax.ShapeDtypeStruct((N, E), jnp.float32),
        grid=(N // tile_n,),
        in_specs=[
            pl.BlockSpec((tile_n * patches_per_frame, K), lambda i: (i, 0)),
            pl.BlockSpec((K, E), lambda i: (0, 0)),
            pl.BlockSpec((1, E), lambda i: (0, 0)),
            pl.BlockSpec((tile_n, E), lambda i: (i, 0)),
        ],
        out_specs=pl.BlockSpec((tile_n, E), lambda i: (i, 0)),
        compiler_params=pltpu.CompilerParams(
            dimension_semantics=("parallel",)),
    )(patches2d, conv_w, conv_b, pe_full)


# ------------------------------------------------------------------
# Transformer encoder stack: all nn.TransformerEncoderLayer's in ONE kernel
# (post-LN, ReLU activation, eval-mode dropout = identity)
# ------------------------------------------------------------------
def _layer_norm(x, g, b, eps=1e-5):
    mu = jnp.mean(x, axis=-1, keepdims=True)
    xc = x - mu
    var = jnp.mean(xc * xc, axis=-1, keepdims=True)
    return xc * jax.lax.rsqrt(var + eps) * g + b


def _encoder_stack_kernel(x_ref, bias_ref,
                          wqkv_ref, bqkv_ref, wo_ref, bo_ref,
                          ln1g_ref, ln1b_ref,
                          w1_ref, b1_ref, w2_ref, b2_ref,
                          ln2g_ref, ln2b_ref,
                          out_ref, *, num_heads):
    layer = pl.program_id(0)

    # Layer-resident activations: out block has a constant index_map along the
    # (arbitrary) layer axis, so it lives in VMEM across all layers and is
    # written back to HBM only once at the end.
    @pl.when(layer == 0)
    def _():
        out_ref[...] = x_ref[...]

    x = out_ref[...]                                       # (B, S, E) f32
    B, S, E = x.shape
    hd = E // num_heads
    scale = 1.0 / math.sqrt(hd)
    x2 = x.reshape(B * S, E)

    # Fused QKV projection: one bf16 MXU matmul, lane width 3E.
    qkv = jnp.dot(x2.astype(jnp.bfloat16), wqkv_ref[0],
                  preferred_element_type=jnp.float32) + bqkv_ref[0]
    # Fold the 1/sqrt(hd) scale into q (cheap, (B*S,E)) instead of scores.
    q = (qkv[:, :E] * scale).reshape(B, S, E).astype(jnp.bfloat16)
    k = qkv[:, E:2 * E].reshape(B, S, E).astype(jnp.bfloat16)
    v = qkv[:, 2 * E:].reshape(B, S, E).astype(jnp.bfloat16)

    bias = bias_ref[...][:, None, :]                       # (B, 1, S), hoisted

    # TODO(synk): heads handled by a tiny static loop (nhead=2); a batched
    # (B*nh, S, hd) einsum would avoid lane slices/concat for larger nhead.
    ctx_heads = []
    for h in range(num_heads):
        sl = slice(h * hd, (h + 1) * hd)
        s = jnp.einsum('bqd,bkd->bqk', q[:, :, sl], k[:, :, sl],
                       preferred_element_type=jnp.float32)
        s = s + bias                                       # mask padded keys
        s = s - jnp.max(s, axis=-1, keepdims=True)
        p = jnp.exp(s)
        p = p * pl.reciprocal(jnp.sum(p, axis=-1, keepdims=True), approx=True)
        ctx_heads.append(jnp.einsum('bqk,bkd->bqd', p.astype(jnp.bfloat16),
                                    v[:, :, sl],
                                    preferred_element_type=jnp.float32))
    ctx = jnp.concatenate(ctx_heads, axis=-1).reshape(B * S, E)

    attn = jnp.dot(ctx.astype(jnp.bfloat16), wo_ref[0],
                   preferred_element_type=jnp.float32) + bo_ref[0]

    # residual + LayerNorm1 in f32 (dropout is identity in eval mode)
    h1 = _layer_norm(x2 + attn, ln1g_ref[0], ln1b_ref[0])

    # feed-forward: linear2(relu(linear1(x))), bf16 matmuls / f32 accumulate
    ff = jnp.maximum(
        jnp.dot(h1.astype(jnp.bfloat16), w1_ref[0],
                preferred_element_type=jnp.float32) + b1_ref[0], 0.0)
    ff = jnp.dot(ff.astype(jnp.bfloat16), w2_ref[0],
                 preferred_element_type=jnp.float32) + b2_ref[0]
    h2 = _layer_norm(h1 + ff, ln2g_ref[0], ln2b_ref[0])

    out_ref[...] = h2.reshape(B, S, E)


def encoder_stack(x, bias, p, *, num_heads):
    B, S, E = x.shape
    L = p['wqkv'].shape[0]
    F = p['w1'].shape[-1]

    def wspec(*tail):  # stacked per-layer param: leading layer dim indexed by l
        return pl.BlockSpec((1,) + tail, lambda l: (l,) + (0,) * len(tail))

    in_specs = [
        pl.BlockSpec((B, S, E), lambda l: (0, 0, 0)),      # x (constant block)
        pl.BlockSpec((B, S), lambda l: (0, 0)),            # key-padding bias
        wspec(E, 3 * E), wspec(1, 3 * E),                  # wqkv, bqkv
        wspec(E, E), wspec(1, E),                          # wo, bo
        wspec(1, E), wspec(1, E),                          # ln1 gamma/beta
        wspec(E, F), wspec(1, F),                          # w1, b1
        wspec(F, E), wspec(1, E),                          # w2, b2
        wspec(1, E), wspec(1, E),                          # ln2 gamma/beta
    ]
    return pl.pallas_call(
        partial(_encoder_stack_kernel, num_heads=num_heads),
        out_shape=jax.ShapeDtypeStruct((B, S, E), jnp.float32),
        grid=(L,),
        in_specs=in_specs,
        out_specs=pl.BlockSpec((B, S, E), lambda l: (0, 0, 0)),
        compiler_params=pltpu.CompilerParams(
            dimension_semantics=("arbitrary",)),
    )(x, bias, p['wqkv'], p['bqkv'], p['wo'], p['bo'],
      p['ln1g'], p['ln1b'], p['w1'], p['b1'], p['w2'], p['b2'],
      p['ln2g'], p['ln2b'])


# ------------------------------------------------------------------
# Glue: im2col, positional-encoding table, parameters, full forward
# ------------------------------------------------------------------
def im2col(frames, kh=3, kw=3):
    N, H, W, C = frames.shape
    Ho, Wo = H - kh + 1, W - kw + 1
    cols = jnp.stack([frames[:, dh:dh + Ho, dw:dw + Wo, :]
                      for dh in range(kh) for dw in range(kw)], axis=3)
    return cols.reshape(N, Ho * Wo, kh * kw * C)           # (N, P, K)


def positional_encoding(seq_len, embed_dim):
    position = jnp.arange(seq_len, dtype=jnp.float32)[:, None]
    div_term = jnp.exp(jnp.arange(0, embed_dim, 2, dtype=jnp.float32)
                       * (-math.log(10000.0) / embed_dim))
    pe = jnp.zeros((seq_len, embed_dim), jnp.float32)
    pe = pe.at[:, 0::2].set(jnp.sin(position * div_term))
    pe = pe.at[:, 1::2].set(jnp.cos(position * div_term))
    return pe


def init_params(key, in_channels, hidden_dim, num_layers, dim_ff, kh=3, kw=3):
    keys = jax.random.split(key, 1 + num_layers)
    K = kh * kw * in_channels
    E = hidden_dim
    conv_w = (jax.random.normal(keys[0], (K, E), jnp.float32) * 0.1
              ).astype(jnp.bfloat16)
    conv_b = jnp.zeros((1, E), jnp.float32)

    per_layer = []
    for l in range(num_layers):
        lk = jax.random.split(keys[1 + l], 6)
        nrm = lambda k_, shp: jax.random.normal(k_, shp, jnp.float32) * 0.1
        wq, wk, wv = nrm(lk[0], (E, E)), nrm(lk[1], (E, E)), nrm(lk[2], (E, E))
        wqkv = jnp.concatenate([wq, wk, wv], axis=1)       # packed in_proj
        wo = nrm(lk[3], (E, E))
        w1 = nrm(lk[4], (E, dim_ff))
        w2 = nrm(lk[5], (dim_ff, E))
        per_layer.append(dict(
            wqkv=wqkv.astype(jnp.bfloat16),
            bqkv=jnp.zeros((1, 3 * E), jnp.float32),
            wo=wo.astype(jnp.bfloat16), bo=jnp.zeros((1, E), jnp.float32),
            ln1g=jnp.ones((1, E), jnp.float32),
            ln1b=jnp.zeros((1, E), jnp.float32),
            w1=w1.astype(jnp.bfloat16), b1=jnp.zeros((1, dim_ff), jnp.float32),
            w2=w2.astype(jnp.bfloat16), b2=jnp.zeros((1, E), jnp.float32),
            ln2g=jnp.ones((1, E), jnp.float32),
            ln2b=jnp.zeros((1, E), jnp.float32)))

    # stack per-layer params along a leading layer axis for the layer grid
    stacked = {name: jnp.stack([lp[name] for lp in per_layer], axis=0)
               for name in per_layer[0]}
    return conv_w, conv_b, stacked


def transformer_encoder_forward(inputs, lengths, params, *, num_heads):
    conv_w, conv_b, stacked = params
    B, S, H, W, C = inputs.shape
    E = conv_w.shape[1]

    # CNN stand-in over each frame (im2col glue + one Pallas matmul kernel,
    # with the positional-encoding add fused into the kernel epilogue).
    frames = inputs.reshape(B * S, H, W, C)
    patches = im2col(frames)                               # (N, P, K)
    N, P, K = patches.shape
    patches2d = patches.reshape(N * P, K).astype(jnp.bfloat16)
    pe_full = jnp.tile(positional_encoding(S, E), (B, 1))  # (N, E)
    feat = cnn_forward(patches2d, conv_w, conv_b, pe_full, patches_per_frame=P)
    x = feat.reshape(B, S, E)

    # src_key_padding_mask: True (padded) where position >= length -> -1e9 bias
    pos = jnp.arange(S)[None, :]
    bias = jnp.where(pos >= lengths[:, None], -1e9, 0.0).astype(jnp.float32)

    y = encoder_stack(x, bias, stacked, num_heads=num_heads)   # (B, S, E)

    # PyTorch output convention: (seq, batch, hidden).
    # TODO(synk): for large B*S*E fold this permute into the last layer's
    # output write instead of a wrapper-side transpose.
    return jnp.transpose(y, (1, 0, 2))


if __name__ == "__main__":
    B, S, H, W, C = 2, 8, 8, 8, 3
    hidden_dim, num_layers, num_heads, dim_ff = 32, 2, 2, 128

    key = jax.random.PRNGKey(0)
    k_in, k_par = jax.random.split(key)
    inputs = jax.random.normal(k_in, (B, S, H, W, C), jnp.float32)
    lengths = jnp.array([8, 5], dtype=jnp.int32)

    params = init_params(k_par, C, hidden_dim, num_layers, dim_ff)
    out = transformer_encoder_forward(inputs, lengths, params,
                                      num_heads=num_heads)
    out = jax.block_until_ready(out)
    assert out.shape == (S, B, hidden_dim)
    assert bool(jnp.all(jnp.isfinite(out)))
    print("KERNEL_OK")
</pallas_src>

<mosaic_0001>
module attributes {stable_mosaic.version = 11 : i64} {
  func.func @_cnn_pe_kernel(%arg0: i32, %arg1: memref<576x27xbf16, #tpu.memory_space<vmem>>, %arg2: memref<27x32xbf16, #tpu.memory_space<vmem>>, %arg3: memref<1x32xf32, #tpu.memory_space<vmem>>, %arg4: memref<16x32xf32, #tpu.memory_space<vmem>>, %arg5: memref<16x32xf32, #tpu.memory_space<vmem>>) attributes {dimension_semantics = [#tpu.dimension_semantics<parallel>], iteration_bounds = array<i64: 1>, scalar_prefetch = 0 : i64, scratch_operands = 0 : i64, tpu.core_type = #tpu.core_type<tc>, window_params = [{transform_indices = @transform_0, window_bounds = array<i64: 576, 27>}, {pipeline_mode = #tpu.pipeline_mode<synchronous>, transform_indices = @transform_1, window_bounds = array<i64: 27, 32>}, {pipeline_mode = #tpu.pipeline_mode<synchronous>, transform_indices = @transform_2, window_bounds = array<i64: 1, 32>}, {transform_indices = @transform_3, window_bounds = array<i64: 16, 32>}, {transform_indices = @transform_4, window_bounds = array<i64: 16, 32>}]} {
    %c0 = arith.constant 0 : index
    %c0_0 = arith.constant 0 : index
    %0 = vector.load %arg1[%c0, %c0_0] : memref<576x27xbf16, #tpu.memory_space<vmem>>, vector<576x27xbf16>
    %c0_1 = arith.constant 0 : index
    %c0_2 = arith.constant 0 : index
    %1 = vector.load %arg2[%c0_1, %c0_2] : memref<27x32xbf16, #tpu.memory_space<vmem>>, vector<27x32xbf16>
    %cst = arith.constant dense<0.000000e+00> : vector<576x32xf32>
    %2 = tpu.matmul %0, %1, %cst {dimension_numbers = #tpu.dot_dimension_numbers<[1], [0], [0], [1], [0, 0, 1, 1], [], []>} : vector<576x27xbf16>, vector<27x32xbf16>, vector<576x32xf32> -> vector<576x32xf32>
    %c0_3 = arith.constant 0 : index
    %c0_4 = arith.constant 0 : index
    %3 = vector.load %arg3[%c0_3, %c0_4] : memref<1x32xf32, #tpu.memory_space<vmem>>, vector<1x32xf32>
    %4 = vector.shape_cast %3 : vector<1x32xf32> to vector<32xf32>
    %5 = vector.shape_cast %4 : vector<32xf32> to vector<1x32xf32>
    %6 = vector.broadcast %5 : vector<1x32xf32> to vector<576x32xf32>
    %7 = arith.addf %2, %6 : vector<576x32xf32>
    %cst_5 = arith.constant 0.000000e+00 : f32
    %8 = vector.broadcast %cst_5 : f32 to vector<576x32xf32>
    %9 = arith.maximumf %7, %8 : vector<576x32xf32>
    %10 = vector.shape_cast %9 : vector<576x32xf32> to vector<16x36x32xf32>
    %cst_6 = arith.constant dense<0.000000e+00> : vector<16x32xf32>
    %11 = vector.multi_reduction <add>, %10, %cst_6 [1] : vector<16x36x32xf32> to vector<16x32xf32>
    %cst_7 = arith.constant 3.600000e+01 : f32
    %12 = vector.broadcast %cst_7 : f32 to vector<16x32xf32>
    %13 = arith.divf %11, %12 : vector<16x32xf32>
    %c0_8 = arith.constant 0 : index
    %c0_9 = arith.constant 0 : index
    %14 = vector.load %arg4[%c0_8, %c0_9] : memref<16x32xf32, #tpu.memory_space<vmem>>, vector<16x32xf32>
    %15 = arith.addf %13, %14 : vector<16x32xf32>
    %c0_10 = arith.constant 0 : index
    %c0_11 = arith.constant 0 : index
    %16 = vector.load %arg5[%c0_10, %c0_11] : memref<16x32xf32, #tpu.memory_space<vmem>>, vector<16x32xf32>
    tpu.vector_store %arg5[%c0_10, %c0_11], %15 {strides = array<i32>} : memref<16x32xf32, #tpu.memory_space<vmem>>, vector<16x32xf32>,
    return
  }
  func.func @transform_0(%arg0: i32) -> (i32, i32) {
    %c0_i32 = arith.constant 0 : i32
    %c0_i32_0 = arith.constant 0 : i32
    return %arg0, %c0_i32 : i32, i32
  }
  func.func @transform_1(%arg0: i32) -> (i32, i32) {
    %c0_i32 = arith.constant 0 : i32
    %c0_i32_0 = arith.constant 0 : i32
    %c0_i32_1 = arith.constant 0 : i32
    return %c0_i32, %c0_i32_0 : i32, i32
  }
  func.func @transform_2(%arg0: i32) -> (i32, i32) {
    %c0_i32 = arith.constant 0 : i32
    %c0_i32_0 = arith.constant 0 : i32
    %c0_i32_1 = arith.constant 0 : i32
    return %c0_i32, %c0_i32_0 : i32, i32
  }
  func.func @transform_3(%arg0: i32) -> (i32, i32) {
    %c0_i32 = arith.constant 0 : i32
    %c0_i32_0 = arith.constant 0 : i32
    return %arg0, %c0_i32 : i32, i32
  }
  func.func @transform_4(%arg0: i32) -> (i32, i32) {
    %c0_i32 = arith.constant 0 : i32
    %c0_i32_0 = arith.constant 0 : i32
    return %arg0, %c0_i32 : i32, i32
  }
}

</mosaic_0001>

<llo_original>
// kernel: tpu_custom_call.1
$region0: #{tpu_custom_call.1}
  #allocation0 [shape = 'u32[]', space=smem, size = 0x4, offset = 0x4, fixed_abs, tag = 'smem constant byte address 0x4 - core index']
  #allocation1 [shape = 'u32[144,128]{1,0:T(1,128)}', space=vmem, size = 0x12000, scoped, tag = 'internal scratch']
  %s0 = inlined_call_operand.vmem [shape: bf16[576,27], index: 0, kind: input, shape index: {}]
  %s1 = inlined_call_operand.vmem [shape: bf16[27,32], index: 1, kind: input, shape index: {}]
  %s2 = inlined_call_operand.vmem [shape: f32[1,32], index: 2, kind: input, shape index: {}]
  %s3 = inlined_call_operand.vmem [shape: f32[16,32], index: 3, kind: input, shape index: {}]
  %s4 = inlined_call_operand.hbm [shape: f32[16,32], index: 4, kind: output, shape index: {}]
  %s5 = sld [smem:[#allocation0]]
  $region26: #{tpu_custom_call.1} parent=0
    _
  %s7 = ssub.s32 1, %s5
  %s8 = scalar_select 0, %s7, %s5
  $region1: #{tpu_custom_call.1} parent=0
    #allocation2 [shape = 'u8[8192]{0}', space=vmem, size = 0x2000, scoped, tag = 'output window, operand 0, single buffered']
    #allocation3 [shape = 's32[1]{0}', space=sflag, size = 0x4, scoped, tag = 'scoped memory for tpu_custom_call.1']
    %9 = vsyncpa [#allocation3], 0
    // Predicated region
    $region2: #{tpu_custom_call.1} parent=1 // pred_check
      _
    $region3: #{tpu_custom_call.1} parent=1 // pred_check_branch
      %11 = sbr.rel (0) target = $region5
    $region4: #{tpu_custom_call.1} parent=1 // pred_region
      _
    $region5: #{tpu_custom_call.1} parent=1 // pred_fallthru
      _
    // Predicated region
    $region6: #{tpu_custom_call.1} parent=1 // pred_check
      _
    $region7: #{tpu_custom_call.1} parent=1 // pred_check_branch
      %13 = sbr.rel (0) target = $region9
    $region8: #{tpu_custom_call.1} parent=1 // pred_region
      _
    $region9: #{tpu_custom_call.1} parent=1 // pred_fallthru
      _
    // Predicated region
    $region10: #{tpu_custom_call.1} parent=1 // pred_check
      _
    $region11: #{tpu_custom_call.1} parent=1 // pred_check_branch
      %15 = sbr.rel (0) target = $region13
    $region12: #{tpu_custom_call.1} parent=1 // pred_region
      _
    $region13: #{tpu_custom_call.1} parent=1 // pred_fallthru
      _
    // Predicated region
    $region14: #{tpu_custom_call.1} parent=1 // pred_check
      _
    $region15: #{tpu_custom_call.1} parent=1 // pred_check_branch
      %17 = sbr.rel (0) target = $region17
    $region16: #{tpu_custom_call.1} parent=1 // pred_region
      _
    $region17: #{tpu_custom_call.1} parent=1 // pred_fallthru
      _
    %v19 = vld [vmem:[%s0] sm:$0xf]
    %v20 = vld [vmem:[%s0 + $0x4] sm:$0xf]
    %v21 = vld [vmem:[%s0 + $0x8] sm:$0xf]
    %v22 = vld [vmem:[%s0 + $0xc] sm:$0xf]
    %v23 = vld [vmem:[%s0 + $0x10] sm:$0xf]
    %v24 = vld [vmem:[%s0 + $0x14] sm:$0xf]
    %v25 = vld [vmem:[%s0 + $0x18] sm:$0xf]
    %v26 = vld [vmem:[%s0 + $0x1c] sm:$0xf]
    %v27 = vld [vmem:[%s0 + $0x20] sm:$0xf]
    %v28 = vld [vmem:[%s0 + $0x24] sm:$0xf]
    %v29 = vld [vmem:[%s0 + $0x28] sm:$0xf]
    %v30 = vld [vmem:[%s0 + $0x2c] sm:$0xf]
    %v31 = vld [vmem:[%s0 + $0x30] sm:$0xf]
    %v32 = vld [vmem:[%s0 + $0x34] sm:$0xf]
    %v33 = vld [vmem:[%s0 + $0x38] sm:$0xf]
    %v34 = vld [vmem:[%s0 + $0x3c] sm:$0xf]
    %v35 = vld [vmem:[%s0 + $0x40] sm:$0xf]
    %v36 = vld [vmem:[%s0 + $0x44] sm:$0xf]
    %v37 = vld [vmem:[%s0 + $0x48] sm:$0xf]
    %v38 = vld [vmem:[%s0 + $0x4c] sm:$0xf]
    %v39 = vld [vmem:[%s0 + $0x50] sm:$0xf]
    %v40 = vld [vmem:[%s0 + $0x54] sm:$0xf]
    %v41 = vld [vmem:[%s0 + $0x58] sm:$0xf]
    %v42 = vld [vmem:[%s0 + $0x5c] sm:$0xf]
    %v43 = vld [vmem:[%s0 + $0x60] sm:$0xf]
    %v44 = vld [vmem:[%s0 + $0x64] sm:$0xf]
    %v45 = vld [vmem:[%s0 + $0x68] sm:$0xf]
    %v46 = vld [vmem:[%s0 + $0x6c] sm:$0xf]
    %v47 = vld [vmem:[%s0 + $0x70] sm:$0xf]
    %v48 = vld [vmem:[%s0 + $0x74] sm:$0xf]
    %v49 = vld [vmem:[%s0 + $0x78] sm:$0xf]
    %v50 = vld [vmem:[%s0 + $0x7c] sm:$0xf]
    %v51 = vld [vmem:[%s0 + $0x80] sm:$0xf]
    %v52 = vld [vmem:[%s0 + $0x84] sm:$0xf]
    %v53 = vld [vmem:[%s0 + $0x88] sm:$0xf]
    %v54 = vld [vmem:[%s0 + $0x8c] sm:$0xf]
    %v55 = vld [vmem:[%s0 + $0x90] sm:$0xf]
    %v56 = vld [vmem:[%s0 + $0x94] sm:$0xf]
    %v57 = vld [vmem:[%s0 + $0x98] sm:$0xf]
    %v58 = vld [vmem:[%s0 + $0x9c] sm:$0xf]
    %v59 = vld [vmem:[%s0 + $0xa0] sm:$0xf]
    %v60 = vld [vmem:[%s0 + $0xa4] sm:$0xf]
    %v61 = vld [vmem:[%s0 + $0xa8] sm:$0xf]
    %v62 = vld [vmem:[%s0 + $0xac] sm:$0xf]
    %v63 = vld [vmem:[%s0 + $0xb0] sm:$0xf]
    %v64 = vld [vmem:[%s0 + $0xb4] sm:$0xf]
    %v65 = vld [vmem:[%s0 + $0xb8] sm:$0xf]
    %v66 = vld [vmem:[%s0 + $0xbc] sm:$0xf]
    %v67 = vld [vmem:[%s0 + $0xc0] sm:$0xf]
    %v68 = vld [vmem:[%s0 + $0xc4] sm:$0xf]
    %v69 = vld [vmem:[%s0 + $0xc8] sm:$0xf]
    %v70 = vld [vmem:[%s0 + $0xcc] sm:$0xf]
    %v71 = vld [vmem:[%s0 + $0xd0] sm:$0xf]
    %v72 = vld [vmem:[%s0 + $0xd4] sm:$0xf]
    %v73 = vld [vmem:[%s0 + $0xd8] sm:$0xf]
    %v74 = vld [vmem:[%s0 + $0xdc] sm:$0xf]
    %v75 = vld [vmem:[%s0 + $0xe0] sm:$0xf]
    %v76 = vld [vmem:[%s0 + $0xe4] sm:$0xf]
    %v77 = vld [vmem:[%s0 + $0xe8] sm:$0xf]
    %v78 = vld [vmem:[%s0 + $0xec] sm:$0xf]
    %v79 = vld [vmem:[%s0 + $0xf0] sm:$0xf]
    %v80 = vld [vmem:[%s0 + $0xf4] sm:$0xf]
    %v81 = vld [vmem:[%s0 + $0xf8] sm:$0xf]
    %v82 = vld [vmem:[%s0 + $0xfc] sm:$0xf]
    %v83 = vld [vmem:[%s0 + $0x100] sm:$0xf]
    %v84 = vld [vmem:[%s0 + $0x104] sm:$0xf]
    %v85 = vld [vmem:[%s0 + $0x108] sm:$0xf]
    %v86 = vld [vmem:[%s0 + $0x10c] sm:$0xf]
    %v87 = vld [vmem:[%s0 + $0x110] sm:$0xf]
    %v88 = vld [vmem:[%s0 + $0x114] sm:$0xf]
    %v89 = vld [vmem:[%s0 + $0x118] sm:$0xf]
    %v90 = vld [vmem:[%s0 + $0x11c] sm:$0xf]
    %v91 = vld [vmem:[%s1] sm:$0xf]
    %v92 = vld [vmem:[%s1 + $0x4] sm:$0xf]
    %v93 = vld [vmem:[%s1 + $0x8] sm:$0xf]
    %v94 = vld [vmem:[%s1 + $0xc] sm:$0x3]
    %v95 = vld [vmem:[%s2] sm:$0x1]
    %v97 = vlaneseq
    %v98 = vshrl.u32 %v97, 7
    %v99 = vsub.s32 0, %v98
    %v100 = vrot.slane %v95, %v99
    %v174 = vunpack.c.l.b16 %v19
    %v175 = vunpack.c.l.b16 %v20
    %v176 = vunpack.c.l.b16 %v21
    %v177 = vunpack.c.l.b16 %v22
    %v178 = vunpack.c.l.b16 %v23
    %v179 = vunpack.c.l.b16 %v24
    %v180 = vunpack.c.l.b16 %v25
    %v181 = vunpack.c.l.b16 %v26
    %v182 = vunpack.c.l.b16 %v27
    %v183 = vunpack.c.l.b16 %v28
    %v184 = vunpack.c.l.b16 %v29
    %v185 = vunpack.c.l.b16 %v30
    %v186 = vunpack.c.l.b16 %v31
    %v187 = vunpack.c.l.b16 %v32
    %v188 = vunpack.c.l.b16 %v33
    %v189 = vunpack.c.l.b16 %v34
    %v190 = vunpack.c.l.b16 %v35
    %v191 = vunpack.c.l.b16 %v36
    %v192 = vunpack.c.l.b16 %v37
    %v193 = vunpack.c.l.b16 %v38
    %v194 = vunpack.c.l.b16 %v39
    %v195 = vunpack.c.l.b16 %v40
    %v196 = vunpack.c.l.b16 %v41
    %v197 = vunpack.c.l.b16 %v42
    %v198 = vunpack.c.l.b16 %v43
    %v199 = vunpack.c.l.b16 %v44
    %v200 = vunpack.c.l.b16 %v45
    %v201 = vunpack.c.l.b16 %v46
    %v202 = vunpack.c.l.b16 %v47
    %v203 = vunpack.c.l.b16 %v48
    %v204 = vunpack.c.l.b16 %v49
    %v205 = vunpack.c.l.b16 %v50
    %v206 = vunpack.c.l.b16 %v51
    %v207 = vunpack.c.l.b16 %v52
    %v208 = vunpack.c.l.b16 %v53
    %v209 = vunpack.c.l.b16 %v54
    %v210 = vunpack.c.l.b16 %v55
    %v211 = vunpack.c.l.b16 %v56
    %v212 = vunpack.c.l.b16 %v57
    %v213 = vunpack.c.l.b16 %v58
    %v214 = vunpack.c.l.b16 %v59
    %v215 = vunpack.c.l.b16 %v60
    %v216 = vunpack.c.l.b16 %v61
    %v217 = vunpack.c.l.b16 %v62
    %v218 = vunpack.c.l.b16 %v63
    %v219 = vunpack.c.l.b16 %v64
    %v220 = vunpack.c.l.b16 %v65
    %v221 = vunpack.c.l.b16 %v66
    %v222 = vunpack.c.l.b16 %v67
    %v223 = vunpack.c.l.b16 %v68
    %v224 = vunpack.c.l.b16 %v69
    %v225 = vunpack.c.l.b16 %v70
    %v226 = vunpack.c.l.b16 %v71
    %v227 = vunpack.c.l.b16 %v72
    %v228 = vunpack.c.l.b16 %v73
    %v229 = vunpack.c.l.b16 %v74
    %v230 = vunpack.c.l.b16 %v75
    %v231 = vunpack.c.l.b16 %v76
    %v232 = vunpack.c.l.b16 %v77
    %v233 = vunpack.c.l.b16 %v78
    %v234 = vunpack.c.l.b16 %v79
    %v235 = vunpack.c.l.b16 %v80
    %v236 = vunpack.c.l.b16 %v81
    %v237 = vunpack.c.l.b16 %v82
    %v238 = vunpack.c.l.b16 %v83
    %v239 = vunpack.c.l.b16 %v84
    %v240 = vunpack.c.l.b16 %v85
    %v241 = vunpack.c.l.b16 %v86
    %v242 = vunpack.c.l.b16 %v87
    %v243 = vunpack.c.l.b16 %v88
    %v244 = vunpack.c.l.b16 %v89
    %v245 = vunpack.c.l.b16 %v90
    %v246 = vpack.c.b16 %v175, %v174
    %v247 = vpack.c.b16 %v177, %v176
    %v248 = vpack.c.b16 %v179, %v178
    %v249 = vpack.c.b16 %v181, %v180
    %v250 = vpack.c.b16 %v183, %v182
    %v251 = vpack.c.b16 %v185, %v184
    %v252 = vpack.c.b16 %v187, %v186
    %v253 = vpack.c.b16 %v189, %v188
    %v254 = vpack.c.b16 %v191, %v190
    %v255 = vpack.c.b16 %v193, %v192
    %v256 = vpack.c.b16 %v195, %v194
    %v257 = vpack.c.b16 %v197, %v196
    %v258 = vpack.c.b16 %v199, %v198
    %v259 = vpack.c.b16 %v201, %v200
    %v260 = vpack.c.b16 %v203, %v202
    %v261 = vpack.c.b16 %v205, %v204
    %v262 = vpack.c.b16 %v207, %v206
    %v263 = vpack.c.b16 %v209, %v208
    %v264 = vpack.c.b16 %v211, %v210
    %v265 = vpack.c.b16 %v213, %v212
    %v266 = vpack.c.b16 %v215, %v214
    %v267 = vpack.c.b16 %v217, %v216
    %v268 = vpack.c.b16 %v219, %v218
    %v269 = vpack.c.b16 %v221, %v220
    %v270 = vpack.c.b16 %v223, %v222
    %v271 = vpack.c.b16 %v225, %v224
    %v272 = vpack.c.b16 %v227, %v226
    %v273 = vpack.c.b16 %v229, %v228
    %v274 = vpack.c.b16 %v231, %v230
    %v275 = vpack.c.b16 %v233, %v232
    %v276 = vpack.c.b16 %v235, %v234
    %v277 = vpack.c.b16 %v237, %v236
    %v278 = vpack.c.b16 %v239, %v238
    %v279 = vpack.c.b16 %v241, %v240
    %v280 = vpack.c.b16 %v243, %v242
    %v281 = vpack.c.b16 %v245, %v244
    %v286 = vunpack.c.l.b16 %v91
    %v287 = vunpack.c.l.b16 %v92
    %v288 = vunpack.c.l.b16 %v93
    %v289 = vunpack.c.l.b16 %v94
    %v290 = vpack.c.b16 %v287, %v286
    %v291 = vpack.c.b16 %v289, %v288
    %vm293 = vcmask 220160
    %v295 = vsel %vm293, %v246, 0
    %v298 = vsel %vm293, %v247, 0
    %v301 = vsel %vm293, %v248, 0
    %v304 = vsel %vm293, %v249, 0
    %v307 = vsel %vm293, %v250, 0
    %v310 = vsel %vm293, %v251, 0
    %v313 = vsel %vm293, %v252, 0
    %v316 = vsel %vm293, %v253, 0
    %v319 = vsel %vm293, %v254, 0
    %v322 = vsel %vm293, %v255, 0
    %v325 = vsel %vm293, %v256, 0
    %v328 = vsel %vm293, %v257, 0
    %v331 = vsel %vm293, %v258, 0
    %v334 = vsel %vm293, %v259, 0
    %v337 = vsel %vm293, %v260, 0
    %v340 = vsel %vm293, %v261, 0
    %v343 = vsel %vm293, %v262, 0
    %v346 = vsel %vm293, %v263, 0
    %v349 = vsel %vm293, %v264, 0
    %v352 = vsel %vm293, %v265, 0
    %v355 = vsel %vm293, %v266, 0
    %v358 = vsel %vm293, %v267, 0
    %v361 = vsel %vm293, %v268, 0
    %v364 = vsel %vm293, %v269, 0
    %v367 = vsel %vm293, %v270, 0
    %v370 = vsel %vm293, %v271, 0
    %v373 = vsel %vm293, %v272, 0
    %v376 = vsel %vm293, %v273, 0
    %v379 = vsel %vm293, %v274, 0
    %v382 = vsel %vm293, %v275, 0
    %v385 = vsel %vm293, %v276, 0
    %v388 = vsel %vm293, %v277, 0
    %v391 = vsel %vm293, %v278, 0
    %v394 = vsel %vm293, %v279, 0
    %v397 = vsel %vm293, %v280, 0
    %v400 = vsel %vm293, %v281, 0
    %vm402 = vcmask 1044480
    %vm403 = vcmask 1045504
    %v404 = vsel %vm402, 4294967295, 65535
    %v405 = vsel %vm403, %v404, 0
    %v407 = vand.u32 %v291, %v405
    %409 = vmatprep.subr.bf16.mxu0 0
    %410 = vmatpush1.bf16.msra.mxu0 %v290
    %411 = vmatprep.subr.bf16.mxu0 0
    %412 = vmatpush1.bf16.msra.mxu0 %v407
    %413 = vmatprep.subr.bf16.mxu0 0
    %414 = vmatpush1.bf16.msra.mxu0 0
    %415 = vmatprep.subr.bf16.mxu0 0
    %416 = vmatpush1.bf16.msra.mxu0 0
    %417 = vmatprep.subr.bf16.mxu0 0
    %418 = vmatpush1.bf16.msra.mxu0 0
    %419 = vmatprep.subr.bf16.mxu0 0
    %420 = vmatpush1.bf16.msra.mxu0 0
    %421 = vmatprep.subr.bf16.mxu0 0
    %422 = vmatpush1.bf16.msra.mxu0 0
    %423 = vmatprep.subr.bf16.mxu0 0
    %424 = vmatpush1.bf16.msra.mxu0 0
    %425 = vmatprep.subr.bf16.mxu0 0
    %426 = vmatpush1.bf16.msra.mxu0 0
    %427 = vmatprep.subr.bf16.mxu0 0
    %428 = vmatpush1.bf16.msra.mxu0 0
    %429 = vmatprep.subr.bf16.mxu0 0
    %430 = vmatpush1.bf16.msra.mxu0 0
    %431 = vmatprep.subr.bf16.mxu0 0
    %432 = vmatpush1.bf16.msra.mxu0 0
    %433 = vmatprep.subr.bf16.mxu0 0
    %434 = vmatpush1.bf16.msra.mxu0 0
    %435 = vmatprep.subr.bf16.mxu0 0
    %436 = vmatpush1.bf16.msra.mxu0 0
    %437 = vmatprep.subr.bf16.mxu0 0
    %438 = vmatpush1.bf16.msra.mxu0 0
    %439 = vmatprep.subr.bf16.mxu0 0
    %440 = vmatpush1.bf16.msra.mxu0 0
    %441 = vmatprep.mubr.bf16.mxu0 0
    %442 = vmatmul.mubr.bf16.gmra.mrb[0].mxu0 %v295
    %v443 = vpop.f32.mrb[0].mxu0
    %v444 = vadd.f32 %v100, %v443
    %v445 = vpop.f32.mrb[0].mxu0
    %v446 = vpop.f32.mrb[0].mxu0
    %v447 = vadd.f32 %v100, %v446
    %v448 = vpop.f32.mrb[0].mxu0
    %449 = vmatprep.mubr.bf16.mxu0 0
    %450 = vmatmul.mubr.bf16.gmra.mrb[0].mxu0 %v298
    %v451 = vpop.f32.mrb[0].mxu0
    %v452 = vadd.f32 %v100, %v451
    %v453 = vpop.f32.mrb[0].mxu0
    %v454 = vpop.f32.mrb[0].mxu0
    %v455 = vadd.f32 %v100, %v454
    %v456 = vpop.f32.mrb[0].mxu0
    %457 = vmatprep.mubr.bf16.mxu0 0
    %458 = vmatmul.mubr.bf16.gmra.mrb[0].mxu0 %v301
    %v459 = vpop.f32.mrb[0].mxu0
    %v460 = vadd.f32 %v100, %v459
    %v461 = vpop.f32.mrb[0].mxu0
    %v462 = vpop.f32.mrb[0].mxu0
    %v463 = vadd.f32 %v100, %v462
    %v464 = vpop.f32.mrb[0].mxu0
    %465 = vmatprep.mubr.bf16.mxu0 0
    %466 = vmatmul.mubr.bf16.gmra.mrb[0].mxu0 %v304
    %v467 = vpop.f32.mrb[0].mxu0
    %v468 = vadd.f32 %v100, %v467
    %v469 = vpop.f32.mrb[0].mxu0
    %v470 = vpop.f32.mrb[0].mxu0
    %v471 = vadd.f32 %v100, %v470
    %v472 = vpop.f32.mrb[0].mxu0
    %473 = vmatprep.mubr.bf16.mxu0 0
    %474 = vmatmul.mubr.bf16.gmra.mrb[0].mxu0 %v307
    %v475 = vpop.f32.mrb[0].mxu0
    %v476 = vadd.f32 %v100, %v475
    %v477 = vpop.f32.mrb[0].mxu0
    %v478 = vpop.f32.mrb[0].mxu0
    %v479 = vadd.f32 %v100, %v478
    %v480 = vpop.f32.mrb[0].mxu0
    %481 = vmatprep.mubr.bf16.mxu0 0
    %482 = vmatmul.mubr.bf16.gmra.mrb[0].mxu0 %v310
    %v483 = vpop.f32.mrb[0].mxu0
    %v484 = vadd.f32 %v100, %v483
    %v485 = vpop.f32.mrb[0].mxu0
    %v486 = vpop.f32.mrb[0].mxu0
    %v487 = vadd.f32 %v100, %v486
    %v488 = vpop.f32.mrb[0].mxu0
    %489 = vmatprep.mubr.bf16.mxu0 0
    %490 = vmatmul.mubr.bf16.gmra.mrb[0].mxu0 %v313
    %v491 = vpop.f32.mrb[0].mxu0
    %v492 = vadd.f32 %v100, %v491
    %v493 = vpop.f32.mrb[0].mxu0
    %v494 = vpop.f32.mrb[0].mxu0
    %v495 = vadd.f32 %v100, %v494
    %v496 = vpop.f32.mrb[0].mxu0
    %497 = vmatprep.mubr.bf16.mxu0 0
    %498 = vmatmul.mubr.bf16.gmra.mrb[0].mxu0 %v316
    %v499 = vpop.f32.mrb[0].mxu0
    %v500 = vadd.f32 %v100, %v499
    %v501 = vpop.f32.mrb[0].mxu0
    %v502 = vpop.f32.mrb[0].mxu0
    %v503 = vadd.f32 %v100, %v502
    %v504 = vpop.f32.mrb[0].mxu0
    %505 = vmatprep.mubr.bf16.mxu0 0
    %506 = vmatmul.mubr.bf16.gmra.mrb[0].mxu0 %v319
    %v507 = vpop.f32.mrb[0].mxu0
    %v508 = vadd.f32 %v100, %v507
    %v509 = vpop.f32.mrb[0].mxu0
    %v510 = vpop.f32.mrb[0].mxu0
    %v511 = vadd.f32 %v100, %v510
    %v512 = vpop.f32.mrb[0].mxu0
    %513 = vmatprep.mubr.bf16.mxu0 0
    %514 = vmatmul.mubr.bf16.gmra.mrb[0].mxu0 %v322
    %v515 = vpop.f32.mrb[0].mxu0
    %v516 = vadd.f32 %v100, %v515
    %v517 = vpop.f32.mrb[0].mxu0
    %v518 = vpop.f32.mrb[0].mxu0
    %v519 = vadd.f32 %v100, %v518
    %v520 = vpop.f32.mrb[0].mxu0
    %521 = vmatprep.mubr.bf16.mxu0 0
    %522 = vmatmul.mubr.bf16.gmra.mrb[0].mxu0 %v325
    %v523 = vpop.f32.mrb[0].mxu0
    %v524 = vadd.f32 %v100, %v523
    %v525 = vpop.f32.mrb[0].mxu0
    %v526 = vpop.f32.mrb[0].mxu0
    %v527 = vadd.f32 %v100, %v526
    %v528 = vpop.f32.mrb[0].mxu0
    %529 = vmatprep.mubr.bf16.mxu0 0
    %530 = vmatmul.mubr.bf16.gmra.mrb[0].mxu0 %v328
    %v531 = vpop.f32.mrb[0].mxu0
    %v532 = vadd.f32 %v100, %v531
    %v533 = vpop.f32.mrb[0].mxu0
    %v534 = vpop.f32.mrb[0].mxu0
    %v535 = vadd.f32 %v100, %v534
    %v536 = vpop.f32.mrb[0].mxu0
    %537 = vmatprep.mubr.bf16.mxu0 0
    %538 = vmatmul.mubr.bf16.gmra.mrb[0].mxu0 %v331
    %v539 = vpop.f32.mrb[0].mxu0
    %v540 = vadd.f32 %v100, %v539
    %v541 = vpop.f32.mrb[0].mxu0
    %v542 = vpop.f32.mrb[0].mxu0
    %v543 = vadd.f32 %v100, %v542
    %v544 = vpop.f32.mrb[0].mxu0
    %545 = vmatprep.mubr.bf16.mxu0 0
    %546 = vmatmul.mubr.bf16.gmra.mrb[0].mxu0 %v334
    %v547 = vpop.f32.mrb[0].mxu0
    %v548 = vadd.f32 %v100, %v547
    %v549 = vpop.f32.mrb[0].mxu0
    %v550 = vpop.f32.mrb[0].mxu0
    %v551 = vadd.f32 %v100, %v550
    %v552 = vpop.f32.mrb[0].mxu0
    %553 = vmatprep.mubr.bf16.mxu0 0
    %554 = vmatmul.mubr.bf16.gmra.mrb[0].mxu0 %v337
    %v555 = vpop.f32.mrb[0].mxu0
    %v556 = vadd.f32 %v100, %v555
    %v557 = vpop.f32.mrb[0].mxu0
    %v558 = vpop.f32.mrb[0].mxu0
    %v559 = vadd.f32 %v100, %v558
    %v560 = vpop.f32.mrb[0].mxu0
    %561 = vmatprep.mubr.bf16.mxu0 0
    %562 = vmatmul.mubr.bf16.gmra.mrb[0].mxu0 %v340
    %v563 = vpop.f32.mrb[0].mxu0
    %v564 = vadd.f32 %v100, %v563
    %v565 = vpop.f32.mrb[0].mxu0
    %v566 = vpop.f32.mrb[0].mxu0
    %v567 = vadd.f32 %v100, %v566
    %v568 = vpop.f32.mrb[0].mxu0
    %569 = vmatprep.mubr.bf16.mxu0 0
    %570 = vmatmul.mubr.bf16.gmra.mrb[0].mxu0 %v343
    %v571 = vpop.f32.mrb[0].mxu0
    %v572 = vadd.f32 %v100, %v571
    %v573 = vpop.f32.mrb[0].mxu0
    %v574 = vpop.f32.mrb[0].mxu0
    %v575 = vadd.f32 %v100, %v574
    %v576 = vpop.f32.mrb[0].mxu0
    %577 = vmatprep.mubr.bf16.mxu0 0
    %578 = vmatmul.mubr.bf16.gmra.mrb[0].mxu0 %v346
    %v579 = vpop.f32.mrb[0].mxu0
    %v580 = vadd.f32 %v100, %v579
    %v581 = vpop.f32.mrb[0].mxu0
    %v582 = vpop.f32.mrb[0].mxu0
    %v583 = vadd.f32 %v100, %v582
    %v584 = vpop.f32.mrb[0].mxu0
    %585 = vmatprep.mubr.bf16.mxu0 0
    %586 = vmatmul.mubr.bf16.gmra.mrb[0].mxu0 %v349
    %v587 = vpop.f32.mrb[0].mxu0
    %v588 = vadd.f32 %v100, %v587
    %v589 = vpop.f32.mrb[0].mxu0
    %v590 = vpop.f32.mrb[0].mxu0
    %v591 = vadd.f32 %v100, %v590
    %v592 = vpop.f32.mrb[0].mxu0
    %593 = vmatprep.mubr.bf16.mxu0 0
    %594 = vmatmul.mubr.bf16.gmra.mrb[0].mxu0 %v352
    %v595 = vpop.f32.mrb[0].mxu0
    %v596 = vadd.f32 %v100, %v595
    %v597 = vpop.f32.mrb[0].mxu0
    %v598 = vpop.f32.mrb[0].mxu0
    %v599 = vadd.f32 %v100, %v598
    %v600 = vpop.f32.mrb[0].mxu0
    %601 = vmatprep.mubr.bf16.mxu0 0
    %602 = vmatmul.mubr.bf16.gmra.mrb[0].mxu0 %v355
    %v603 = vpop.f32.mrb[0].mxu0
    %v604 = vadd.f32 %v100, %v603
    %v605 = vpop.f32.mrb[0].mxu0
    %v606 = vpop.f32.mrb[0].mxu0
    %v607 = vadd.f32 %v100, %v606
    %v608 = vpop.f32.mrb[0].mxu0
    %609 = vmatprep.mubr.bf16.mxu0 0
    %610 = vmatmul.mubr.bf16.gmra.mrb[0].mxu0 %v358
    %v611 = vpop.f32.mrb[0].mxu0
    %v612 = vadd.f32 %v100, %v611
    %v613 = vpop.f32.mrb[0].mxu0
    %v614 = vpop.f32.mrb[0].mxu0
    %v615 = vadd.f32 %v100, %v614
    %v616 = vpop.f32.mrb[0].mxu0
    %617 = vmatprep.mubr.bf16.mxu0 0
    %618 = vmatmul.mubr.bf16.gmra.mrb[0].mxu0 %v361
    %v619 = vpop.f32.mrb[0].mxu0
    %v620 = vadd.f32 %v100, %v619
    %v621 = vpop.f32.mrb[0].mxu0
    %v622 = vpop.f32.mrb[0].mxu0
    %v623 = vadd.f32 %v100, %v622
    %v624 = vpop.f32.mrb[0].mxu0
    %625 = vmatprep.mubr.bf16.mxu0 0
    %626 = vmatmul.mubr.bf16.gmra.mrb[0].mxu0 %v364
    %v627 = vpop.f32.mrb[0].mxu0
    %v628 = vadd.f32 %v100, %v627
    %v629 = vpop.f32.mrb[0].mxu0
    %v630 = vpop.f32.mrb[0].mxu0
    %v631 = vadd.f32 %v100, %v630
    %v632 = vpop.f32.mrb[0].mxu0
    %633 = vmatprep.mubr.bf16.mxu0 0
    %634 = vmatmul.mubr.bf16.gmra.mrb[0].mxu0 %v367
    %v635 = vpop.f32.mrb[0].mxu0
    %v636 = vadd.f32 %v100, %v635
    %v637 = vpop.f32.mrb[0].mxu0
    %v638 = vpop.f32.mrb[0].mxu0
    %v639 = vadd.f32 %v100, %v638
    %v640 = vpop.f32.mrb[0].mxu0
    %641 = vmatprep.mubr.bf16.mxu0 0
    %642 = vmatmul.mubr.bf16.gmra.mrb[0].mxu0 %v370
    %v643 = vpop.f32.mrb[0].mxu0
    %v644 = vadd.f32 %v100, %v643
    %v645 = vpop.f32.mrb[0].mxu0
    %v646 = vpop.f32.mrb[0].mxu0
    %v647 = vadd.f32 %v100, %v646
    %v648 = vpop.f32.mrb[0].mxu0
    %649 = vmatprep.mubr.bf16.mxu0 0
    %650 = vmatmul.mubr.bf16.gmra.mrb[0].mxu0 %v373
    %v651 = vpop.f32.mrb[0].mxu0
    %v652 = vadd.f32 %v100, %v651
    %v653 = vpop.f32.mrb[0].mxu0
    %v654 = vpop.f32.mrb[0].mxu0
    %v655 = vadd.f32 %v100, %v654
    %v656 = vpop.f32.mrb[0].mxu0
    %657 = vmatprep.mubr.bf16.mxu0 0
    %658 = vmatmul.mubr.bf16.gmra.mrb[0].mxu0 %v376
    %v659 = vpop.f32.mrb[0].mxu0
    %v660 = vadd.f32 %v100, %v659
    %v661 = vpop.f32.mrb[0].mxu0
    %v662 = vpop.f32.mrb[0].mxu0
    %v663 = vadd.f32 %v100, %v662
    %v664 = vpop.f32.mrb[0].mxu0
    %665 = vmatprep.mubr.bf16.mxu0 0
    %666 = vmatmul.mubr.bf16.gmra.mrb[0].mxu0 %v379
    %v667 = vpop.f32.mrb[0].mxu0
    %v668 = vadd.f32 %v100, %v667
    %v669 = vpop.f32.mrb[0].mxu0
    %v670 = vpop.f32.mrb[0].mxu0
    %v671 = vadd.f32 %v100, %v670
    %v672 = vpop.f32.mrb[0].mxu0
    %673 = vmatprep.mubr.bf16.mxu0 0
    %674 = vmatmul.mubr.bf16.gmra.mrb[0].mxu0 %v382
    %v675 = vpop.f32.mrb[0].mxu0
    %v676 = vadd.f32 %v100, %v675
    %v677 = vpop.f32.mrb[0].mxu0
    %v678 = vpop.f32.mrb[0].mxu0
    %v679 = vadd.f32 %v100, %v678
    %v680 = vpop.f32.mrb[0].mxu0
    %681 = vmatprep.mubr.bf16.mxu0 0
    %682 = vmatmul.mubr.bf16.gmra.mrb[0].mxu0 %v385
    %v683 = vpop.f32.mrb[0].mxu0
    %v684 = vadd.f32 %v100, %v683
    %v685 = vpop.f32.mrb[0].mxu0
    %v686 = vpop.f32.mrb[0].mxu0
    %v687 = vadd.f32 %v100, %v686
    %v688 = vpop.f32.mrb[0].mxu0
    %689 = vmatprep.mubr.bf16.mxu0 0
    %690 = vmatmul.mubr.bf16.gmra.mrb[0].mxu0 %v388
    %v691 = vpop.f32.mrb[0].mxu0
    %v692 = vadd.f32 %v100, %v691
    %v693 = vpop.f32.mrb[0].mxu0
    %v694 = vpop.f32.mrb[0].mxu0
    %v695 = vadd.f32 %v100, %v694
    %v696 = vpop.f32.mrb[0].mxu0
    %697 = vmatprep.mubr.bf16.mxu0 0
    %698 = vmatmul.mubr.bf16.gmra.mrb[0].mxu0 %v391
    %v699 = vpop.f32.mrb[0].mxu0
    %v700 = vadd.f32 %v100, %v699
    %v701 = vpop.f32.mrb[0].mxu0
    %v702 = vpop.f32.mrb[0].mxu0
    %v703 = vadd.f32 %v100, %v702
    %v704 = vpop.f32.mrb[0].mxu0
    %705 = vmatprep.mubr.bf16.mxu0 0
    %706 = vmatmul.mubr.bf16.gmra.mrb[0].mxu0 %v394
    %v707 = vpop.f32.mrb[0].mxu0
    %v708 = vadd.f32 %v100, %v707
    %v709 = vpop.f32.mrb[0].mxu0
    %v710 = vpop.f32.mrb[0].mxu0
    %v711 = vadd.f32 %v100, %v710
    %v712 = vpop.f32.mrb[0].mxu0
    %713 = vmatprep.mubr.bf16.mxu0 0
    %714 = vmatmul.mubr.bf16.gmra.mrb[0].mxu0 %v397
    %v715 = vpop.f32.mrb[0].mxu0
    %v716 = vadd.f32 %v100, %v715
    %v717 = vpop.f32.mrb[0].mxu0
    %v718 = vpop.f32.mrb[0].mxu0
    %v719 = vadd.f32 %v100, %v718
    %v720 = vpop.f32.mrb[0].mxu0
    %721 = vmatprep.mubr.bf16.mxu0 0
    %722 = vmatmul.mubr.bf16.gmra.mrb[0].mxu0 %v400
    %v723 = vpop.f32.mrb[0].mxu0
    %v724 = vadd.f32 %v100, %v723
    %v725 = vpop.f32.mrb[0].mxu0
    %v726 = vpop.f32.mrb[0].mxu0
    %v727 = vadd.f32 %v100, %v726
    %v728 = vpop.f32.mrb[0].mxu0
    %729 = vdwg.mxu0
    %v730 = vmax.f32 %v444, 0.0
    %v731 = vmax.f32 %v447, 0.0
    %v732 = vmax.f32 %v452, 0.0
    %v733 = vmax.f32 %v455, 0.0
    %v734 = vmax.f32 %v460, 0.0
    %v735 = vmax.f32 %v463, 0.0
    %v736 = vmax.f32 %v468, 0.0
    %v737 = vmax.f32 %v471, 0.0
    %v738 = vmax.f32 %v476, 0.0
    %v739 = vmax.f32 %v479, 0.0
    %v740 = vmax.f32 %v484, 0.0
    %v741 = vmax.f32 %v487, 0.0
    %v742 = vmax.f32 %v492, 0.0
    %v743 = vmax.f32 %v495, 0.0
    %v744 = vmax.f32 %v500, 0.0
    %v745 = vmax.f32 %v503, 0.0
    %v746 = vmax.f32 %v508, 0.0
    %v747 = vmax.f32 %v511, 0.0
    %v748 = vmax.f32 %v516, 0.0
    %v749 = vmax.f32 %v519, 0.0
    %v750 = vmax.f32 %v524, 0.0
    %v751 = vmax.f32 %v527, 0.0
    %v752 = vmax.f32 %v532, 0.0
    %v753 = vmax.f32 %v535, 0.0
    %v754 = vmax.f32 %v540, 0.0
    %v755 = vmax.f32 %v543, 0.0
    %v756 = vmax.f32 %v548, 0.0
    %v757 = vmax.f32 %v551, 0.0
    %v758 = vmax.f32 %v556, 0.0
    %v759 = vmax.f32 %v559, 0.0
    %v760 = vmax.f32 %v564, 0.0
    %v761 = vmax.f32 %v567, 0.0
    %v762 = vmax.f32 %v572, 0.0
    %v763 = vmax.f32 %v575, 0.0
    %v764 = vmax.f32 %v580, 0.0
    %v765 = vmax.f32 %v583, 0.0
    %v766 = vmax.f32 %v588, 0.0
    %v767 = vmax.f32 %v591, 0.0
    %v768 = vmax.f32 %v596, 0.0
    %v769 = vmax.f32 %v599, 0.0
    %v770 = vmax.f32 %v604, 0.0
    %v771 = vmax.f32 %v607, 0.0
    %v772 = vmax.f32 %v612, 0.0
    %v773 = vmax.f32 %v615, 0.0
    %v774 = vmax.f32 %v620, 0.0
    %v775 = vmax.f32 %v623, 0.0
    %v776 = vmax.f32 %v628, 0.0
    %v777 = vmax.f32 %v631, 0.0
    %v778 = vmax.f32 %v636, 0.0
    %v779 = vmax.f32 %v639, 0.0
    %v780 = vmax.f32 %v644, 0.0
    %v781 = vmax.f32 %v647, 0.0
    %v782 = vmax.f32 %v652, 0.0
    %v783 = vmax.f32 %v655, 0.0
    %v784 = vmax.f32 %v660, 0.0
    %v785 = vmax.f32 %v663, 0.0
    %v786 = vmax.f32 %v668, 0.0
    %v787 = vmax.f32 %v671, 0.0
    %v788 = vmax.f32 %v676, 0.0
    %v789 = vmax.f32 %v679, 0.0
    %v790 = vmax.f32 %v684, 0.0
    %v791 = vmax.f32 %v687, 0.0
    %v792 = vmax.f32 %v692, 0.0
    %v793 = vmax.f32 %v695, 0.0
    %v794 = vmax.f32 %v700, 0.0
    %v795 = vmax.f32 %v703, 0.0
    %v796 = vmax.f32 %v708, 0.0
    %v797 = vmax.f32 %v711, 0.0
    %v798 = vmax.f32 %v716, 0.0
    %v799 = vmax.f32 %v719, 0.0
    %v800 = vmax.f32 %v724, 0.0
    %v801 = vmax.f32 %v727, 0.0
    %v874 = vcombine.high %v730, %v730
    %v875 = vcombine.high %v731, %v731
    %v876 = vcombine.high %v732, %v732
    %v877 = vcombine.high %v733, %v733
    %v878 = vcombine.high %v734, %v734
    %v879 = vcombine.high %v735, %v735
    %v880 = vcombine.high %v736, %v736
    %v881 = vcombine.high %v737, %v737
    %v882 = vcombine.high %v738, %v738
    %v883 = vcombine.high %v739, %v739
    %v884 = vcombine.high %v740, %v740
    %v885 = vcombine.high %v741, %v741
    %v886 = vcombine.high %v742, %v742
    %v887 = vcombine.high %v743, %v743
    %v888 = vcombine.high %v744, %v744
    %v889 = vcombine.high %v745, %v745
    %v890 = vcombine.high %v746, %v746
    %v891 = vcombine.high %v747, %v747
    %v892 = vcombine.high %v748, %v748
    %v893 = vcombine.high %v749, %v749
    %v894 = vcombine.high %v750, %v750
    %v895 = vcombine.high %v751, %v751
    %v896 = vcombine.high %v752, %v752
    %v897 = vcombine.high %v753, %v753
    %v898 = vcombine.high %v754, %v754
    %v899 = vcombine.high %v755, %v755
    %v900 = vcombine.high %v756, %v756
    %v901 = vcombine.high %v757, %v757
    %v902 = vcombine.high %v758, %v758
    %v903 = vcombine.high %v759, %v759
    %v904 = vcombine.high %v760, %v760
    %v905 = vcombine.high %v761, %v761
    %v906 = vcombine.high %v762, %v762
    %v907 = vcombine.high %v763, %v763
    %v908 = vcombine.high %v764, %v764
    %v909 = vcombine.high %v765, %v765
    %v910 = vcombine.high %v766, %v766
    %v911 = vcombine.high %v767, %v767
    %v912 = vcombine.high %v768, %v768
    %v913 = vcombine.high %v769, %v769
    %v914 = vcombine.high %v770, %v770
    %v915 = vcombine.high %v771, %v771
    %v916 = vcombine.high %v772, %v772
    %v917 = vcombine.high %v773, %v773
    %v918 = vcombine.high %v774, %v774
    %v919 = vcombine.high %v775, %v775
    %v920 = vcombine.high %v776, %v776
    %v921 = vcombine.high %v777, %v777
    %v922 = vcombine.high %v778, %v778
    %v923 = vcombine.high %v779, %v779
    %v924 = vcombine.high %v780, %v780
    %v925 = vcombine.high %v781, %v781
    %v926 = vcombine.high %v782, %v782
    %v927 = vcombine.high %v783, %v783
    %v928 = vcombine.high %v784, %v784
    %v929 = vcombine.high %v785, %v785
    %v930 = vcombine.high %v786, %v786
    %v931 = vcombine.high %v787, %v787
    %v932 = vcombine.high %v788, %v788
    %v933 = vcombine.high %v789, %v789
    %v934 = vcombine.high %v790, %v790
    %v935 = vcombine.high %v791, %v791
    %v936 = vcombine.high %v792, %v792
    %v937 = vcombine.high %v793, %v793
    %v938 = vcombine.high %v794, %v794
    %v939 = vcombine.high %v795, %v795
    %v940 = vcombine.high %v796, %v796
    %v941 = vcombine.high %v797, %v797
    %v942 = vcombine.high %v798, %v798
    %v943 = vcombine.high %v799, %v799
    %v944 = vcombine.high %v800, %v800
    %v945 = vcombine.high %v801, %v801
    %v954 = vcombine.low %v730, %v874
    %v955 = vcombine.low %v731, %v875
    %v956 = vcombine.low %v732, %v876
    %v957 = vcombine.low %v733, %v877
    %v958 = vcombine.low %v878, %v735
    %v959 = vcombine.low %v879, %v736
    %v960 = vcombine.low %v880, %v737
    %v961 = vcombine.low %v881, %v738
    %v962 = vcombine.low %v739, %v883
    %v963 = vcombine.low %v740, %v884
    %v964 = vcombine.low %v741, %v885
    %v965 = vcombine.low %v742, %v886
    %v966 = vcombine.low %v887, %v744
    %v967 = vcombine.low %v888, %v745
    %v968 = vcombine.low %v889, %v746
    %v969 = vcombine.low %v890, %v747
    %v970 = vcombine.low %v748, %v892
    %v971 = vcombine.low %v749, %v893
    %v972 = vcombine.low %v750, %v894
    %v973 = vcombine.low %v751, %v895
    %v974 = vcombine.low %v896, %v753
    %v975 = vcombine.low %v897, %v754
    %v976 = vcombine.low %v898, %v755
    %v977 = vcombine.low %v899, %v756
    %v978 = vcombine.low %v757, %v901
    %v979 = vcombine.low %v758, %v902
    %v980 = vcombine.low %v759, %v903
    %v981 = vcombine.low %v760, %v904
    %v982 = vcombine.low %v905, %v762
    %v983 = vcombine.low %v906, %v763
    %v984 = vcombine.low %v907, %v764
    %v985 = vcombine.low %v908, %v765
    %v986 = vcombine.low %v766, %v910
    %v987 = vcombine.low %v767, %v911
    %v988 = vcombine.low %v768, %v912
    %v989 = vcombine.low %v769, %v913
    %v990 = vcombine.low %v914, %v771
    %v991 = vcombine.low %v915, %v772
    %v992 = vcombine.low %v916, %v773
    %v993 = vcombine.low %v917, %v774
    %v994 = vcombine.low %v775, %v919
    %v995 = vcombine.low %v776, %v920
    %v996 = vcombine.low %v777, %v921
    %v997 = vcombine.low %v778, %v922
    %v998 = vcombine.low %v923, %v780
    %v999 = vcombine.low %v924, %v781
    %v1000 = vcombine.low %v925, %v782
    %v1001 = vcombine.low %v926, %v783
    %v1002 = vcombine.low %v784, %v928
    %v1003 = vcombine.low %v785, %v929
    %v1004 = vcombine.low %v786, %v930
    %v1005 = vcombine.low %v787, %v931
    %v1006 = vcombine.low %v932, %v789
    %v1007 = vcombine.low %v933, %v790
    %v1008 = vcombine.low %v934, %v791
    %v1009 = vcombine.low %v935, %v792
    %v1010 = vcombine.low %v793, %v937
    %v1011 = vcombine.low %v794, %v938
    %v1012 = vcombine.low %v795, %v939
    %v1013 = vcombine.low %v796, %v940
    %v1014 = vcombine.low %v941, %v798
    %v1015 = vcombine.low %v942, %v799
    %v1016 = vcombine.low %v943, %v800
    %v1017 = vcombine.low %v944, %v801
    %vm1082 = vcmask 261120
    %v1083 = vsel %vm1082, %v954, 0.0
    %v1084 = vsel %vm1082, %v955, 0.0
    %v1085 = vadd.f32 %v1083, %v1084
    %v1086 = vsel %vm1082, %v956, 0.0
    %v1087 = vadd.f32 %v1085, %v1086
    %v1088 = vsel %vm1082, %v957, 0.0
    %v1089 = vadd.f32 %v1087, %v1088
    %vm1090 = vcmask 257024
    %v1091 = vsel %vm1090, %v734, 0.0
    %v1092 = vadd.f32 %v1089, %v1091
    %v1093 = vrot.slane %v1092, 4
    %v1094 = vadd.f32 %v1092, %v1093
    %v1095 = vrot.slane %v1094, 2
    %v1096 = vadd.f32 %v1094, %v1095
    %v1097 = vrot.slane %v1096, 1
    %v1098 = vadd.f32 %v1096, %v1097
    %v1099 = vsel %vm1082, %v958, 0.0
    %v1100 = vsel %vm1082, %v959, 0.0
    %v1101 = vadd.f32 %v1099, %v1100
    %v1102 = vsel %vm1082, %v960, 0.0
    %v1103 = vadd.f32 %v1101, %v1102
    %v1104 = vsel %vm1082, %v961, 0.0
    %v1105 = vadd.f32 %v1103, %v1104
    %v1106 = vsel %vm1090, %v882, 0.0
    %v1107 = vadd.f32 %v1105, %v1106
    %v1108 = vrot.slane %v1107, 4
    %v1109 = vadd.f32 %v1107, %v1108
    %v1110 = vrot.slane %v1109, 2
    %v1111 = vadd.f32 %v1109, %v1110
    %v1112 = vrot.slane %v1111, 1
    %v1113 = vadd.f32 %v1111, %v1112
    %v1114 = vsel %vm1082, %v962, 0.0
    %v1115 = vsel %vm1082, %v963, 0.0
    %v1116 = vadd.f32 %v1114, %v1115
    %v1117 = vsel %vm1082, %v964, 0.0
    %v1118 = vadd.f32 %v1116, %v1117
    %v1119 = vsel %vm1082, %v965, 0.0
    %v1120 = vadd.f32 %v1118, %v1119
    %v1121 = vsel %vm1090, %v743, 0.0
    %v1122 = vadd.f32 %v1120, %v1121
    %v1123 = vrot.slane %v1122, 4
    %v1124 = vadd.f32 %v1122, %v1123
    %v1125 = vrot.slane %v1124, 2
    %v1126 = vadd.f32 %v1124, %v1125
    %v1127 = vrot.slane %v1126, 1
    %v1128 = vadd.f32 %v1126, %v1127
    %v1129 = vsel %vm1082, %v966, 0.0
    %v1130 = vsel %vm1082, %v967, 0.0
    %v1131 = vadd.f32 %v1129, %v1130
    %v1132 = vsel %vm1082, %v968, 0.0
    %v1133 = vadd.f32 %v1131, %v1132
    %v1134 = vsel %vm1082, %v969, 0.0
    %v1135 = vadd.f32 %v1133, %v1134
    %v1136 = vsel %vm1090, %v891, 0.0
    %v1137 = vadd.f32 %v1135, %v1136
    %v1138 = vrot.slane %v1137, 4
    %v1139 = vadd.f32 %v1137, %v1138
    %v1140 = vrot.slane %v1139, 2
    %v1141 = vadd.f32 %v1139, %v1140
    %v1142 = vrot.slane %v1141, 1
    %v1143 = vadd.f32 %v1141, %v1142
    %v1144 = vsel %vm1082, %v970, 0.0
    %v1145 = vsel %vm1082, %v971, 0.0
    %v1146 = vadd.f32 %v1144, %v1145
    %v1147 = vsel %vm1082, %v972, 0.0
    %v1148 = vadd.f32 %v1146, %v1147
    %v1149 = vsel %vm1082, %v973, 0.0
    %v1150 = vadd.f32 %v1148, %v1149
    %v1151 = vsel %vm1090, %v752, 0.0
    %v1152 = vadd.f32 %v1150, %v1151
    %v1153 = vrot.slane %v1152, 4
    %v1154 = vadd.f32 %v1152, %v1153
    %v1155 = vrot.slane %v1154, 2
    %v1156 = vadd.f32 %v1154, %v1155
    %v1157 = vrot.slane %v1156, 1
    %v1158 = vadd.f32 %v1156, %v1157
    %v1159 = vsel %vm1082, %v974, 0.0
    %v1160 = vsel %vm1082, %v975, 0.0
    %v1161 = vadd.f32 %v1159, %v1160
    %v1162 = vsel %vm1082, %v976, 0.0
    %v1163 = vadd.f32 %v1161, %v1162
    %v1164 = vsel %vm1082, %v977, 0.0
    %v1165 = vadd.f32 %v1163, %v1164
    %v1166 = vsel %vm1090, %v900, 0.0
    %v1167 = vadd.f32 %v1165, %v1166
    %v1168 = vrot.slane %v1167, 4
    %v1169 = vadd.f32 %v1167, %v1168
    %v1170 = vrot.slane %v1169, 2
    %v1171 = vadd.f32 %v1169, %v1170
    %v1172 = vrot.slane %v1171, 1
    %v1173 = vadd.f32 %v1171, %v1172
    %v1174 = vsel %vm1082, %v978, 0.0
    %v1175 = vsel %vm1082, %v979, 0.0
    %v1176 = vadd.f32 %v1174, %v1175
    %v1177 = vsel %vm1082, %v980, 0.0
    %v1178 = vadd.f32 %v1176, %v1177
    %v1179 = vsel %vm1082, %v981, 0.0
    %v1180 = vadd.f32 %v1178, %v1179
    %v1181 = vsel %vm1090, %v761, 0.0
    %v1182 = vadd.f32 %v1180, %v1181
    %v1183 = vrot.slane %v1182, 4
    %v1184 = vadd.f32 %v1182, %v1183
    %v1185 = vrot.slane %v1184, 2
    %v1186 = vadd.f32 %v1184, %v1185
    %v1187 = vrot.slane %v1186, 1
    %v1188 = vadd.f32 %v1186, %v1187
    %v1189 = vsel %vm1082, %v982, 0.0
    %v1190 = vsel %vm1082, %v983, 0.0
    %v1191 = vadd.f32 %v1189, %v1190
    %v1192 = vsel %vm1082, %v984, 0.0
    %v1193 = vadd.f32 %v1191, %v1192
    %v1194 = vsel %vm1082, %v985, 0.0
    %v1195 = vadd.f32 %v1193, %v1194
    %v1196 = vsel %vm1090, %v909, 0.0
    %v1197 = vadd.f32 %v1195, %v1196
    %v1198 = vrot.slane %v1197, 4
    %v1199 = vadd.f32 %v1197, %v1198
    %v1200 = vrot.slane %v1199, 2
    %v1201 = vadd.f32 %v1199, %v1200
    %v1202 = vrot.slane %v1201, 1
    %v1203 = vadd.f32 %v1201, %v1202
    %v1204 = vsel %vm1082, %v986, 0.0
    %v1205 = vsel %vm1082, %v987, 0.0
    %v1206 = vadd.f32 %v1204, %v1205
    %v1207 = vsel %vm1082, %v988, 0.0
    %v1208 = vadd.f32 %v1206, %v1207
    %v1209 = vsel %vm1082, %v989, 0.0
    %v1210 = vadd.f32 %v1208, %v1209
    %v1211 = vsel %vm1090, %v770, 0.0
    %v1212 = vadd.f32 %v1210, %v1211
    %v1213 = vrot.slane %v1212, 4
    %v1214 = vadd.f32 %v1212, %v1213
    %v1215 = vrot.slane %v1214, 2
    %v1216 = vadd.f32 %v1214, %v1215
    %v1217 = vrot.slane %v1216, 1
    %v1218 = vadd.f32 %v1216, %v1217
    %v1219 = vsel %vm1082, %v990, 0.0
    %v1220 = vsel %vm1082, %v991, 0.0
    %v1221 = vadd.f32 %v1219, %v1220
    %v1222 = vsel %vm1082, %v992, 0.0
    %v1223 = vadd.f32 %v1221, %v1222
    %v1224 = vsel %vm1082, %v993, 0.0
    %v1225 = vadd.f32 %v1223, %v1224
    %v1226 = vsel %vm1090, %v918, 0.0
    %v1227 = vadd.f32 %v1225, %v1226
    %v1228 = vrot.slane %v1227, 4
    %v1229 = vadd.f32 %v1227, %v1228
    %v1230 = vrot.slane %v1229, 2
    %v1231 = vadd.f32 %v1229, %v1230
    %v1232 = vrot.slane %v1231, 1
    %v1233 = vadd.f32 %v1231, %v1232
    %v1234 = vsel %vm1082, %v994, 0.0
    %v1235 = vsel %vm1082, %v995, 0.0
    %v1236 = vadd.f32 %v1234, %v1235
    %v1237 = vsel %vm1082, %v996, 0.0
    %v1238 = vadd.f32 %v1236, %v1237
    %v1239 = vsel %vm1082, %v997, 0.0
    %v1240 = vadd.f32 %v1238, %v1239
    %v1241 = vsel %vm1090, %v779, 0.0
    %v1242 = vadd.f32 %v1240, %v1241
    %v1243 = vrot.slane %v1242, 4
    %v1244 = vadd.f32 %v1242, %v1243
    %v1245 = vrot.slane %v1244, 2
    %v1246 = vadd.f32 %v1244, %v1245
    %v1247 = vrot.slane %v1246, 1
    %v1248 = vadd.f32 %v1246, %v1247
    %v1249 = vsel %vm1082, %v998, 0.0
    %v1250 = vsel %vm1082, %v999, 0.0
    %v1251 = vadd.f32 %v1249, %v1250
    %v1252 = vsel %vm1082, %v1000, 0.0
    %v1253 = vadd.f32 %v1251, %v1252
    %v1254 = vsel %vm1082, %v1001, 0.0
    %v1255 = vadd.f32 %v1253, %v1254
    %v1256 = vsel %vm1090, %v927, 0.0
    %v1257 = vadd.f32 %v1255, %v1256
    %v1258 = vrot.slane %v1257, 4
    %v1259 = vadd.f32 %v1257, %v1258
    %v1260 = vrot.slane %v1259, 2
    %v1261 = vadd.f32 %v1259, %v1260
    %v1262 = vrot.slane %v1261, 1
    %v1263 = vadd.f32 %v1261, %v1262
    %v1264 = vsel %vm1082, %v1002, 0.0
    %v1265 = vsel %vm1082, %v1003, 0.0
    %v1266 = vadd.f32 %v1264, %v1265
    %v1267 = vsel %vm1082, %v1004, 0.0
    %v1268 = vadd.f32 %v1266, %v1267
    %v1269 = vsel %vm1082, %v1005, 0.0
    %v1270 = vadd.f32 %v1268, %v1269
    %v1271 = vsel %vm1090, %v788, 0.0
    %v1272 = vadd.f32 %v1270, %v1271
    %v1273 = vrot.slane %v1272, 4
    %v1274 = vadd.f32 %v1272, %v1273
    %v1275 = vrot.slane %v1274, 2
    %v1276 = vadd.f32 %v1274, %v1275
    %v1277 = vrot.slane %v1276, 1
    %v1278 = vadd.f32 %v1276, %v1277
    %v1279 = vsel %vm1082, %v1006, 0.0
    %v1280 = vsel %vm1082, %v1007, 0.0
    %v1281 = vadd.f32 %v1279, %v1280
    %v1282 = vsel %vm1082, %v1008, 0.0
    %v1283 = vadd.f32 %v1281, %v1282
    %v1284 = vsel %vm1082, %v1009, 0.0
    %v1285 = vadd.f32 %v1283, %v1284
    %v1286 = vsel %vm1090, %v936, 0.0
    %v1287 = vadd.f32 %v1285, %v1286
    %v1288 = vrot.slane %v1287, 4
    %v1289 = vadd.f32 %v1287, %v1288
    %v1290 = vrot.slane %v1289, 2
    %v1291 = vadd.f32 %v1289, %v1290
    %v1292 = vrot.slane %v1291, 1
    %v1293 = vadd.f32 %v1291, %v1292
    %v1294 = vsel %vm1082, %v1010, 0.0
    %v1295 = vsel %vm1082, %v1011, 0.0
    %v1296 = vadd.f32 %v1294, %v1295
    %v1297 = vsel %vm1082, %v1012, 0.0
    %v1298 = vadd.f32 %v1296, %v1297
    %v1299 = vsel %vm1082, %v1013, 0.0
    %v1300 = vadd.f32 %v1298, %v1299
    %v1301 = vsel %vm1090, %v797, 0.0
    %v1302 = vadd.f32 %v1300, %v1301
    %v1303 = vrot.slane %v1302, 4
    %v1304 = vadd.f32 %v1302, %v1303
    %v1305 = vrot.slane %v1304, 2
    %v1306 = vadd.f32 %v1304, %v1305
    %v1307 = vrot.slane %v1306, 1
    %v1308 = vadd.f32 %v1306, %v1307
    %v1309 = vsel %vm1082, %v1014, 0.0
    %v1310 = vsel %vm1082, %v1015, 0.0
    %v1311 = vadd.f32 %v1309, %v1310
    %v1312 = vsel %vm1082, %v1016, 0.0
    %v1313 = vadd.f32 %v1311, %v1312
    %v1314 = vsel %vm1082, %v1017, 0.0
    %v1315 = vadd.f32 %v1313, %v1314
    %v1316 = vsel %vm1090, %v945, 0.0
    %v1317 = vadd.f32 %v1315, %v1316
    %v1318 = vrot.slane %v1317, 4
    %v1319 = vadd.f32 %v1317, %v1318
    %v1320 = vrot.slane %v1319, 2
    %v1321 = vadd.f32 %v1319, %v1320
    %v1322 = vrot.slane %v1321, 1
    %v1323 = vadd.f32 %v1321, %v1322
    %v1324 = vrcp.pop 36.0
    %v1325 = vmul.f32 %v1098, %v1324
    %v1326 = vmul.f32 %v1113, %v1324
    %v1327 = vmul.f32 %v1128, %v1324
    %v1328 = vmul.f32 %v1143, %v1324
    %v1329 = vmul.f32 %v1158, %v1324
    %v1330 = vmul.f32 %v1173, %v1324
    %v1331 = vmul.f32 %v1188, %v1324
    %v1332 = vmul.f32 %v1203, %v1324
    %v1333 = vmul.f32 %v1218, %v1324
    %v1334 = vmul.f32 %v1233, %v1324
    %v1335 = vmul.f32 %v1248, %v1324
    %v1336 = vmul.f32 %v1263, %v1324
    %v1337 = vmul.f32 %v1278, %v1324
    %v1338 = vmul.f32 %v1293, %v1324
    %v1339 = vmul.f32 %v1308, %v1324
    %v1340 = vmul.f32 %v1323, %v1324
    %v1341 = vld [vmem:[%s3] sm:$0xff]
    %v1342 = vld [vmem:[%s3 + $0x8] sm:$0xff]
    %v1345 = vrot.slane %v1341, 1
    %v1346 = vrot.slane %v1341, 2
    %v1347 = vrot.slane %v1341, 3
    %v1348 = vrot.slane %v1341, 4
    %v1349 = vrot.slane %v1341, 5
    %v1350 = vrot.slane %v1341, 6
    %v1351 = vrot.slane %v1341, 7
    %v1352 = vrot.slane %v1342, 1
    %v1353 = vrot.slane %v1342, 2
    %v1354 = vrot.slane %v1342, 3
    %v1355 = vrot.slane %v1342, 4
    %v1356 = vrot.slane %v1342, 5
    %v1357 = vrot.slane %v1342, 6
    %v1358 = vrot.slane %v1342, 7
    %v1375 = vadd.f32 %v1325, %v1341
    %v1376 = vadd.f32 %v1326, %v1345
    %v1377 = vadd.f32 %v1327, %v1346
    %v1378 = vadd.f32 %v1328, %v1347
    %v1379 = vadd.f32 %v1329, %v1348
    %v1380 = vadd.f32 %v1330, %v1349
    %v1381 = vadd.f32 %v1331, %v1350
    %v1382 = vadd.f32 %v1332, %v1351
    %v1383 = vadd.f32 %v1333, %v1342
    %v1384 = vadd.f32 %v1334, %v1352
    %v1385 = vadd.f32 %v1335, %v1353
    %v1386 = vadd.f32 %v1336, %v1354
    %v1387 = vadd.f32 %v1337, %v1355
    %v1388 = vadd.f32 %v1338, %v1356
    %v1389 = vadd.f32 %v1339, %v1357
    %v1390 = vadd.f32 %v1340, %v1358
    %v1407 = vrot.slane %v1376, 7
    %vm1408 = vcmask 1041409
    %v1409 = vsel %vm1408, %v1407, %v1375
    %v1410 = vrot.slane %v1377, 6
    %vm1411 = vcmask 1042434
    %v1412 = vsel %vm1411, %v1410, %v1409
    %v1413 = vrot.slane %v1378, 5
    %vm1414 = vcmask 1043459
    %v1415 = vsel %vm1414, %v1413, %v1412
    %v1416 = vrot.slane %v1379, 4
    %vm1417 = vcmask 1044484
    %v1418 = vsel %vm1417, %v1416, %v1415
    %v1419 = vrot.slane %v1380, 3
    %vm1420 = vcmask 1045509
    %v1421 = vsel %vm1420, %v1419, %v1418
    %v1422 = vrot.slane %v1381, 2
    %vm1423 = vcmask 1046534
    %v1424 = vsel %vm1423, %v1422, %v1421
    %v1425 = vrot.slane %v1382, 1
    %vm1426 = vcmask 1047559
    %v1427 = vsel %vm1426, %v1425, %v1424
    %v1428 = vrot.slane %v1384, 7
    %v1429 = vsel %vm1408, %v1428, %v1383
    %v1430 = vrot.slane %v1385, 6
    %v1431 = vsel %vm1411, %v1430, %v1429
    %v1432 = vrot.slane %v1386, 5
    %v1433 = vsel %vm1414, %v1432, %v1431
    %v1434 = vrot.slane %v1387, 4
    %v1435 = vsel %vm1417, %v1434, %v1433
    %v1436 = vrot.slane %v1388, 3
    %v1437 = vsel %vm1420, %v1436, %v1435
    %v1438 = vrot.slane %v1389, 2
    %v1439 = vsel %vm1423, %v1438, %v1437
    %v1440 = vrot.slane %v1390, 1
    %v1441 = vsel %vm1426, %v1440, %v1439
    %1444 = vst.msk [vmem:[#allocation2] sm:$0xff] %vm1082, %v1427
    %1445 = vst.msk [vmem:[#allocation2 + $0x8] sm:$0xff] %vm1082, %v1441
    // Predicated region
    $region18: #{tpu_custom_call.1} parent=1 // pred_check
      _
    $region19: #{tpu_custom_call.1} parent=1 // pred_check_branch
      %1447 = sbr.rel (0) target = $region21
    $region20: #{tpu_custom_call.1} parent=1 // pred_region
      %s1449 = ssub.s32 256, 256
      %1450 = vsyncadd [#allocation3], %s1449
      %s1451 = sshll.u32 [#allocation2], 4
      %s1452 = int_to_ptr.vmem [resolvable:$true] %s1451
      %1457 = dma.vmem_to_hbm [thread:$0]  %s1452, 256, %s4, [#allocation3], 128, 128, 8
    $region21: #{tpu_custom_call.1} parent=1 // pred_fallthru
      _
    // Predicated region
    $region22: #{tpu_custom_call.1} parent=1 // pred_check
      _
    $region23: #{tpu_custom_call.1} parent=1 // pred_check_branch
      %1459 = sbr.rel (0) target = $region25
    $region24: #{tpu_custom_call.1} parent=1 // pred_region
      %1460 = dma.done [#allocation3], 256
    $region25: #{tpu_custom_call.1} parent=1 // pred_fallthru
      _
    %1461 = vsyncpa [#allocation3], 1

</llo_original>
